<compile_context>
chip_gen: v5e
topology: v5e:2x2
jax: 0.10.0
libtpu: 0.0.40
codegen_flags: <defaults>
</compile_context>

<pallas_src>
import functools

import jax
import jax.numpy as jnp
from jax.experimental import pallas as pl
from jax.experimental.pallas import tpu as pltpu


# --------------------------------------------------------------------------- #
# Helpers
# --------------------------------------------------------------------------- #
def _round_up(x, m):
    return ((x + m - 1) // m) * m


@functools.lru_cache(maxsize=1)
def _hw_config():
    """(tile_budget_bytes, vmem_limit_bytes, two_tensorcores) for this chip."""
    vmem_bytes = 128 * 1024 * 1024
    try:
        vmem_bytes = int(pltpu.get_tpu_info().vmem_capacity_bytes)
    except Exception:
        pass
    kind = ""
    try:
        kind = jax.devices()[0].device_kind.lower()
    except Exception:
        pass
    two_tc = "v7" in kind
    if two_tc:  # v7x: 64 MiB physical VMEM per TC
        vmem_bytes = min(vmem_bytes, 64 * 1024 * 1024)
    budget = int(vmem_bytes * 0.75)                       # ~96 MiB v5e/v6e, ~48 MiB v7x
    vmem_limit = min(vmem_bytes - 2 * 1024 * 1024,        # headroom for compiler internals
                     budget + 8 * 1024 * 1024)
    return budget, vmem_limit, two_tc


def _largest_div_tile(total_units, max_units):
    """Largest d <= max_units dividing total_units, in units of 128 lanes."""
    best = 1
    for d in range(1, min(total_units, max(1, max_units)) + 1):
        if total_units % d == 0:
            best = d
    return best * 128


def _pick_tiles(B, Kp, Np, budget, two_tc):
    """Pick (tm, tk, tn); tk | Kp and tn | Np (both multiples of 128)."""
    itemsize = 4  # f32
    units_n = Np // 128
    units_k = Kp // 128

    tm = min(512, _round_up(B, 8))
    tk = Kp          # full-K collapse by default
    tn = Np

    def ws_bytes(tm_, tk_, tn_):
        # double-buffered x/w/bias + double-buffered out + acc scratch
        return itemsize * (2 * tm_ * tk_ + 2 * tk_ * tn_ + 2 * tn_ + 3 * tm_ * tn_)

    # v7x: guarantee >=2 blocks on a 'parallel' axis so both TCs get work.
    if two_tc and _round_up(B, tm) // tm < 2:
        if units_n % 2 == 0 and units_n >= 2:
            tn = Np // 2
        elif B > 8:
            tm = _round_up((B + 1) // 2, 8)

    # Shrink N, then K, then M until the working set fits the VMEM budget.
    max_n_units = tn // 128
    while ws_bytes(tm, tk, tn) > budget and tn > 128:
        max_n_units = max(1, max_n_units // 2)
        tn = _largest_div_tile(units_n, max_n_units)
    max_k_units = tk // 128
    while ws_bytes(tm, tk, tn) > budget and tk > 128:
        max_k_units = max(1, max_k_units // 2)
        tk = _largest_div_tile(units_k, max_k_units)
    while ws_bytes(tm, tk, tn) > budget and tm > 8:
        tm = max(8, _round_up(tm // 2, 8))

    return tm, tk, tn


# --------------------------------------------------------------------------- #
# Kernels
# --------------------------------------------------------------------------- #
def _linear_relu_single_kernel(x_ref, w_ref, b_ref, o_ref):
    """Full-K block: one MXU pass, fused bias + ReLU, no scratch / K loop."""
    acc = jnp.dot(x_ref[...], w_ref[...], preferred_element_type=jnp.float32)
    o_ref[...] = jnp.maximum(acc + b_ref[...], 0.0).astype(o_ref.dtype)


def _linear_relu_tiled_kernel(x_ref, w_ref, b_ref, o_ref, acc_ref):
    """K-reduction grid (only used when grid_k >= 2)."""
    k = pl.program_id(2)
    nk = pl.num_programs(2)

    p = jnp.dot(x_ref[...], w_ref[...], preferred_element_type=jnp.float32)

    @pl.when(k == 0)
    def _first():
        acc_ref[...] = p                      # no zero-init store

    @pl.when(jnp.logical_and(k > 0, k < nk - 1))
    def _mid():
        acc_ref[...] += p

    @pl.when(k == nk - 1)
    def _last():
        # fuse last partial product + bias + ReLU into the output store
        o_ref[...] = jnp.maximum(acc_ref[...] + p + b_ref[...], 0.0).astype(o_ref.dtype)


# --------------------------------------------------------------------------- #
# Wrapper
# --------------------------------------------------------------------------- #
def prepare_params(weight, bias):
    """Hoist ALL weight-side layout plumbing out of the per-call path.

    weight: [out, in] (PyTorch nn.Linear layout) -> [Kp, Np] (transposed, padded)
    bias:   [out]                                -> [1, Np]  (padded)
    Padding K/N to multiples of 128 happens ONCE here, never per forward call.
    """
    out_f, in_f = weight.shape
    Kp, Np = _round_up(in_f, 128), _round_up(out_f, 128)
    w_t = weight.T
    if (Kp, Np) != (in_f, out_f):
        w_t = jnp.pad(w_t, ((0, Kp - in_f), (0, Np - out_f)))
    b2d = bias.reshape(1, -1)
    if Np != out_f:
        b2d = jnp.pad(b2d, ((0, 0), (0, Np - out_f)))
    return w_t, b2d


@functools.partial(jax.jit, static_argnames=("out_features", "tile_budget_bytes"))
def policy_network_forward(x, w_t, b2d, *, out_features, tile_budget_bytes=None):
    """relu(x @ w + b).  x: [B, in], w_t: [Kp, Np] (pre-padded), b2d: [1, Np]."""
    B, K = x.shape
    Kp, Np = w_t.shape
    assert b2d.shape == (1, Np) and Kp >= K

    budget, vmem_limit, two_tc = _hw_config()
    if tile_budget_bytes is not None:
        budget = tile_budget_bytes

    tm, tk, tn = _pick_tiles(B, Kp, Np, budget, two_tc)
    Mp = _round_up(B, tm)

    # Only the (small) activation is padded per call; zeros don't change the GEMM.
    if (Mp, Kp) != (B, K):
        x = jnp.pad(x, ((0, Mp - B), (0, Kp - K)))

    grid_m, grid_n, grid_k = Mp // tm, Np // tn, Kp // tk

    if grid_k == 1:
        # Single full-K block per output tile: no scratch, no reduction loop.
        out_padded = pl.pallas_call(
            _linear_relu_single_kernel,
            out_shape=jax.ShapeDtypeStruct((Mp, Np), x.dtype),
            grid=(grid_m, grid_n),
            in_specs=[
                pl.BlockSpec((tm, Kp), lambda i, j: (i, 0)),   # x
                pl.BlockSpec((Kp, tn), lambda i, j: (0, j)),   # w
                pl.BlockSpec((1, tn), lambda i, j: (0, j)),    # bias
            ],
            out_specs=pl.BlockSpec((tm, tn), lambda i, j: (i, j)),
            compiler_params=pltpu.CompilerParams(
                dimension_semantics=("parallel", "parallel"),
                vmem_limit_bytes=vmem_limit,
            ),
        )(x, w_t, b2d)
    else:
        out_padded = pl.pallas_call(
            _linear_relu_tiled_kernel,
            out_shape=jax.ShapeDtypeStruct((Mp, Np), x.dtype),
            grid=(grid_m, grid_n, grid_k),
            in_specs=[
                pl.BlockSpec((tm, tk), lambda i, j, k: (i, k)),   # x
                pl.BlockSpec((tk, tn), lambda i, j, k: (k, j)),   # w
                pl.BlockSpec((1, tn), lambda i, j, k: (0, j)),    # bias
            ],
            out_specs=pl.BlockSpec((tm, tn), lambda i, j, k: (i, j)),
            scratch_shapes=[pltpu.VMEM((tm, tn), jnp.float32)],
            compiler_params=pltpu.CompilerParams(
                dimension_semantics=("parallel", "parallel", "arbitrary"),
                vmem_limit_bytes=vmem_limit,
            ),
        )(x, w_t, b2d)

    return out_padded[:B, :out_features]


# --------------------------------------------------------------------------- #
# Test
# --------------------------------------------------------------------------- #
def _reference(x, weight, bias):
    return jnp.maximum(x @ weight.T + bias, 0.0)


def _make_linear(key, in_f, out_f):
    kw, kb = jax.random.split(key)
    bound = 1.0 / (in_f ** 0.5)
    w = jax.random.uniform(kw, (out_f, in_f), minval=-bound, maxval=bound,
                           dtype=jnp.float32)
    b = jax.random.uniform(kb, (out_f,), minval=-bound, maxval=bound,
                           dtype=jnp.float32)
    return w, b


if __name__ == "__main__":
    key = jax.random.PRNGKey(0)
    k0, k1, k2, k3 = jax.random.split(key, 4)

    # ---- small shape (typical policy head): single-block fast path ----------
    batch, in_f, out_f = 8, 32, 16
    x = jax.random.normal(k0, (batch, in_f), dtype=jnp.float32)
    w, b = _make_linear(k1, in_f, out_f)
    w_t, b2d = prepare_params(w, b)                       # pad/transpose once

    out = jax.block_until_ready(
        policy_network_forward(x, w_t, b2d, out_features=out_f))
    ref = _reference(x, w, b)
    assert out.shape == (batch, out_f)
    assert jnp.allclose(out, ref, atol=1e-5, rtol=1e-5)

    # ---- larger shape: still collapses on big-VMEM chips, splits on v7x -----
    B2, IN2, OUT2 = 256, 1024, 512
    x2 = jax.random.normal(k2, (B2, IN2), dtype=jnp.float32)
    w2, b2 = _make_linear(k3, IN2, OUT2)
    w2_t, b2_2d = prepare_params(w2, b2)

    out2 = jax.block_until_ready(
        policy_network_forward(x2, w2_t, b2_2d, out_features=OUT2))
    ref2 = _reference(x2, w2, b2)
    assert out2.shape == (B2, OUT2)
    assert jnp.allclose(out2, ref2, atol=1e-4, rtol=1e-4)

    # ---- force the tiled K-reduction path (tiny tile budget) ----------------
    out3 = jax.block_until_ready(
        policy_network_forward(x2, w2_t, b2_2d, out_features=OUT2,
                               tile_budget_bytes=1 << 20))
    assert jnp.allclose(out3, ref2, atol=1e-4, rtol=1e-4)

    print("KERNEL_OK")
</pallas_src>

<mosaic_0001>
module attributes {stable_mosaic.version = 11 : i64} {
  func.func @_linear_relu_single_kernel(%arg0: i32, %arg1: i32, %arg2: memref<8x128xf32, #tpu.memory_space<vmem>>, %arg3: memref<128x128xf32, #tpu.memory_space<vmem>>, %arg4: memref<1x128xf32, #tpu.memory_space<vmem>>, %arg5: memref<8x128xf32, #tpu.memory_space<vmem>>) attributes {dimension_semantics = [#tpu.dimension_semantics<parallel>, #tpu.dimension_semantics<parallel>], iteration_bounds = array<i64: 1, 1>, scalar_prefetch = 0 : i64, scratch_operands = 0 : i64, tpu.core_type = #tpu.core_type<tc>, window_params = [{transform_indices = @transform_0, window_bounds = array<i64: 8, 128>}, {transform_indices = @transform_1, window_bounds = array<i64: 128, 128>}, {transform_indices = @transform_2, window_bounds = array<i64: 1, 128>}, {transform_indices = @transform_3, window_bounds = array<i64: 8, 128>}]} {
    %c0 = arith.constant 0 : index
    %c0_0 = arith.constant 0 : index
    %0 = vector.load %arg2[%c0, %c0_0] : memref<8x128xf32, #tpu.memory_space<vmem>>, vector<8x128xf32>
    %c0_1 = arith.constant 0 : index
    %c0_2 = arith.constant 0 : index
    %1 = vector.load %arg3[%c0_1, %c0_2] : memref<128x128xf32, #tpu.memory_space<vmem>>, vector<128x128xf32>
    %cst = arith.constant dense<0.000000e+00> : vector<8x128xf32>
    %2 = tpu.matmul %0, %1, %cst {dimension_numbers = #tpu.dot_dimension_numbers<[1], [0], [0], [1], [0, 0, 1, 1], [], []>} : vector<8x128xf32>, vector<128x128xf32>, vector<8x128xf32> -> vector<8x128xf32>
    %c0_3 = arith.constant 0 : index
    %c0_4 = arith.constant 0 : index
    %3 = vector.load %arg4[%c0_3, %c0_4] : memref<1x128xf32, #tpu.memory_space<vmem>>, vector<1x128xf32>
    %4 = vector.broadcast %3 : vector<1x128xf32> to vector<8x128xf32>
    %5 = arith.addf %2, %4 : vector<8x128xf32>
    %cst_5 = arith.constant 0.000000e+00 : f32
    %6 = vector.broadcast %cst_5 : f32 to vector<8x128xf32>
    %7 = arith.maximumf %5, %6 : vector<8x128xf32>
    %c0_6 = arith.constant 0 : index
    %c0_7 = arith.constant 0 : index
    %8 = vector.load %arg5[%c0_6, %c0_7] : memref<8x128xf32, #tpu.memory_space<vmem>>, vector<8x128xf32>
    tpu.vector_store %arg5[%c0_6, %c0_7], %7 {strides = array<i32>} : memref<8x128xf32, #tpu.memory_space<vmem>>, vector<8x128xf32>,
    return
  }
  func.func @transform_0(%arg0: i32, %arg1: i32) -> (i32, i32) {
    %c0_i32 = arith.constant 0 : i32
    %c0_i32_0 = arith.constant 0 : i32
    return %arg0, %c0_i32 : i32, i32
  }
  func.func @transform_1(%arg0: i32, %arg1: i32) -> (i32, i32) {
    %c0_i32 = arith.constant 0 : i32
    %c0_i32_0 = arith.constant 0 : i32
    return %c0_i32, %arg1 : i32, i32
  }
  func.func @transform_2(%arg0: i32, %arg1: i32) -> (i32, i32) {
    %c0_i32 = arith.constant 0 : i32
    %c0_i32_0 = arith.constant 0 : i32
    return %c0_i32, %arg1 : i32, i32
  }
  func.func @transform_3(%arg0: i32, %arg1: i32) -> (i32, i32) {
    %c0_i32 = arith.constant 0 : i32
    return %arg0, %arg1 : i32, i32
  }
}

</mosaic_0001>

<llo_original>
// kernel: policy_network_forward.1
$region0: #{policy_network_forward.1}
  #allocation0 [shape = 'u32[]', space=smem, size = 0x4, offset = 0x4, fixed_abs, tag = 'smem constant byte address 0x4 - core index']
  #allocation1 [shape = 'u32[72,128]{1,0:T(1,128)}', space=vmem, size = 0x9000, scoped, tag = 'internal scratch']
  %s0 = inlined_call_operand.vmem [shape: f32[8,128], index: 0, kind: input, shape index: {}]
  %s1 = inlined_call_operand.hbm [shape: f32[128,128], index: 1, kind: input, shape index: {}]
  %s2 = inlined_call_operand.vmem [shape: f32[1,128], index: 2, kind: input, shape index: {}]
  %s3 = inlined_call_operand.hbm [shape: f32[8,128], index: 3, kind: output, shape index: {}]
  %s4 = sld [smem:[#allocation0]]
  $region26: #{policy_network_forward.1} parent=0
    _
  %s6 = ssub.s32 1, %s4
  %s7 = scalar_select 0, %s6, %s4
  $region1: #{policy_network_forward.1} parent=0
    #allocation2 [shape = 'u8[65536]{0}', space=vmem, size = 0x10000, scoped, tag = 'input window, operand 1, single buffered']
    #allocation3 [shape = 's32[1]{0}', space=sflag, size = 0x4, scoped, tag = 'scoped memory for policy_network_forward.1']
    #allocation4 [shape = 's32[1]{0}', space=sflag, size = 0x4, scoped, tag = 'scoped memory for policy_network_forward.1']
    #allocation5 [shape = 'u8[4096]{0}', space=vmem, size = 0x1000, scoped, tag = 'output window, operand 0, single buffered']
    %8 = vsyncpa [#allocation3], 0
    %9 = vsyncpa [#allocation4], 0
    // Predicated region
    $region2: #{policy_network_forward.1} parent=1 // pred_check
      _
    $region3: #{policy_network_forward.1} parent=1 // pred_check_branch
      %11 = sbr.rel (0) target = $region5
    $region4: #{policy_network_forward.1} parent=1 // pred_region
      _
    $region5: #{policy_network_forward.1} parent=1 // pred_fallthru
      _
    // Predicated region
    $region6: #{policy_network_forward.1} parent=1 // pred_check
      _
    $region7: #{policy_network_forward.1} parent=1 // pred_check_branch
      %13 = sbr.rel (0) target = $region9
    $region8: #{policy_network_forward.1} parent=1 // pred_region
      %15 = vsyncadd [#allocation3], 0
      %s16 = sshll.u32 %s1, 4
      %s17 = int_to_ptr.hbm [resolvable:$true] %s16
      %s18 = sshll.u32 [#allocation2], 4
      %s19 = int_to_ptr.vmem [resolvable:$true] %s18
      %24 = dma.hbm_to_vmem [thread:$0]  %s17, 2048, %s19, [#allocation3], 128, 128, 8
    $region9: #{policy_network_forward.1} parent=1 // pred_fallthru
      _
    // Predicated region
    $region10: #{policy_network_forward.1} parent=1 // pred_check
      _
    $region11: #{policy_network_forward.1} parent=1 // pred_check_branch
      %26 = sbr.rel (0) target = $region13
    $region12: #{policy_network_forward.1} parent=1 // pred_region
      _
    $region13: #{policy_network_forward.1} parent=1 // pred_fallthru
      _
    // Predicated region
    $region14: #{policy_network_forward.1} parent=1 // pred_check
      _
    $region15: #{policy_network_forward.1} parent=1 // pred_check_branch
      %28 = sbr.rel (0) target = $region17
    $region16: #{policy_network_forward.1} parent=1 // pred_region
      %30 = dma.done [#allocation3], 2048
    $region17: #{policy_network_forward.1} parent=1 // pred_fallthru
      _
    %v31 = vld [vmem:[%s0] sm:$0xff]
    %v32 = vld [vmem:[#allocation2] sm:$0xff]
    %v33 = vld [vmem:[#allocation2 + $0x8] sm:$0xff]
    %v34 = vld [vmem:[#allocation2 + $0x10] sm:$0xff]
    %v35 = vld [vmem:[#allocation2 + $0x18] sm:$0xff]
    %v36 = vld [vmem:[#allocation2 + $0x20] sm:$0xff]
    %v37 = vld [vmem:[#allocation2 + $0x28] sm:$0xff]
    %v38 = vld [vmem:[#allocation2 + $0x30] sm:$0xff]
    %v39 = vld [vmem:[#allocation2 + $0x38] sm:$0xff]
    %v40 = vld [vmem:[#allocation2 + $0x40] sm:$0xff]
    %v41 = vld [vmem:[#allocation2 + $0x48] sm:$0xff]
    %v42 = vld [vmem:[#allocation2 + $0x50] sm:$0xff]
    %v43 = vld [vmem:[#allocation2 + $0x58] sm:$0xff]
    %v44 = vld [vmem:[#allocation2 + $0x60] sm:$0xff]
    %v45 = vld [vmem:[#allocation2 + $0x68] sm:$0xff]
    %v46 = vld [vmem:[#allocation2 + $0x70] sm:$0xff]
    %v47 = vld [vmem:[#allocation2 + $0x78] sm:$0xff]
    %v48 = vld [vmem:[%s2] sm:$0x1]
    %v50 = vperm.slane %v48, 0
    %52 = vmatpush.msra.mxu0 %v47
    %53 = vmatpush.msra.mxu0 %v46
    %54 = vmatpush.msra.mxu0 %v45
    %55 = vmatpush.msra.mxu0 %v44
    %56 = vmatpush.msra.mxu0 %v43
    %57 = vmatpush.msra.mxu0 %v42
    %58 = vmatpush.msra.mxu0 %v41
    %59 = vmatpush.msra.mxu0 %v40
    %60 = vmatpush.msra.mxu0 %v39
    %61 = vmatpush.msra.mxu0 %v38
    %62 = vmatpush.msra.mxu0 %v37
    %63 = vmatpush.msra.mxu0 %v36
    %64 = vmatpush.msra.mxu0 %v35
    %65 = vmatpush.msra.mxu0 %v34
    %66 = vmatpush.msra.mxu0 %v33
    %67 = vmatpush.msra.mxu0 %v32
    %68 = vmatmul.f32.gmra.mxu0 %v31
    %v69 = vpop.f32.mrf.mxu0
    %v70 = vadd.f32 %v50, %v69
    %71 = vdwg.mxu0
    %v72 = vmax.f32 %v70, 0.0
    %73 = vst [vmem:[#allocation5] sm:$0xff] %v72
    // Predicated region
    $region18: #{policy_network_forward.1} parent=1 // pred_check
      _
    $region19: #{policy_network_forward.1} parent=1 // pred_check_branch
      %75 = sbr.rel (0) target = $region21
    $region20: #{policy_network_forward.1} parent=1 // pred_region
      %77 = vsyncadd [#allocation4], 0
      %s79 = sshll.u32 [#allocation5], 4
      %s80 = int_to_ptr.vmem [resolvable:$true] %s79
      %s81 = sshll.u32 %s3, 4
      %s82 = int_to_ptr.hbm [resolvable:$true] %s81
      %84 = dma.vmem_to_hbm [thread:$0]  %s80, 128, %s82, [#allocation4]
    $region21: #{policy_network_forward.1} parent=1 // pred_fallthru
      _
    // Predicated region
    $region22: #{policy_network_forward.1} parent=1 // pred_check
      _
    $region23: #{policy_network_forward.1} parent=1 // pred_check_branch
      %86 = sbr.rel (0) target = $region25
    $region24: #{policy_network_forward.1} parent=1 // pred_region
      %88 = dma.done [#allocation4], 128
    $region25: #{policy_network_forward.1} parent=1 // pred_fallthru
      _
    %89 = vsyncpa [#allocation3], 1
    %90 = vsyncpa [#allocation4], 1

</llo_original>
